<compile_context>
chip_gen: v7x
topology: tpu7x:2x2x1
jax: 0.10.0
libtpu: 0.0.40
codegen_flags: <defaults>
</compile_context>

<pallas_src>
import functools

import jax
import jax.numpy as jnp
from jax import lax
from jax.experimental import pallas as pl
from jax.experimental.pallas import tpu as pltpu

_EPS = 1e-5  # PyTorch nn.GroupNorm default eps


# --------------------------------------------------------------------------- #
# VMEM / tiling helpers
# --------------------------------------------------------------------------- #
def _vmem_capacity_bytes():
    try:
        info = pltpu.get_tpu_info()
        for attr in ("vmem_capacity_bytes", "vmem_bytes", "vmem_size_bytes"):
            v = getattr(info, attr, None)
            if isinstance(v, int) and v > 0:
                return v
    except Exception:
        pass
    return 64 * 1024 * 1024  # conservative (v7x-sized) fallback


def _vmem_limit_bytes():
    cap = _vmem_capacity_bytes()
    # ~3/4 of physical, capped: ~96 MiB on v5e/v6e (128 MiB), ~48 MiB on v7x (64 MiB).
    return min((cap * 3) // 4, 96 * 1024 * 1024)


def _round_up(x, m):
    return ((x + m - 1) // m) * m


def _largest_divisor_leq(n, cap):
    cap = max(1, min(n, cap))
    for d in range(cap, 0, -1):
        if n % d == 0:
            return d
    return 1


def _pick_spatial_tile(hw_pad, c, bytes_per_elem, budget):
    """Largest multiple-of-128 divisor of hw_pad whose (1, C, t) block fits budget."""
    m = hw_pad // 128
    for d in range(m, 0, -1):
        if m % d == 0 and c * (d * 128) * bytes_per_elem <= budget:
            return d * 128
    return 128  # minimum lane-dense tile; budget is advisory at this point


def _pick_batch_tile(n, per_sample_block_bytes, budget):
    tb_bytes_cap = max(1, budget // max(1, per_sample_block_bytes))
    # Keep >= 2 batch grid steps when possible (v7x dual-TensorCore utilization).
    tb_cap = min(tb_bytes_cap, n // 2) if n >= 2 else 1
    return _largest_divisor_leq(n, max(1, tb_cap))


# --------------------------------------------------------------------------- #
# Kernels
# --------------------------------------------------------------------------- #
def _fused_groupnorm_kernel(x_ref, gamma_ref, beta_ref, o_ref, *,
                            inv_count, pad_count, eps, elementwise_fn):
    """Single-pass: stats + normalize + affine (+ fused elementwise fn), one HBM read."""
    x = x_ref[...].astype(jnp.float32)                          # (TB, C, HWp)
    mean = jnp.sum(x, axis=(1, 2), keepdims=True) * inv_count   # (TB, 1, 1)
    xc = x - mean                                               # exact centered moment
    sq = jnp.sum(xc * xc, axis=(1, 2), keepdims=True)
    if pad_count > 0.0:
        # Padded lanes hold x == 0 -> xc == -mean; remove their exact contribution.
        sq = sq - pad_count * (mean * mean)
    var = jnp.maximum(sq * inv_count, 0.0)
    inv_std = lax.rsqrt(var + eps)
    scale = gamma_ref[...] * inv_std                            # (TB, C, 1)
    y = xc * scale + beta_ref[...]
    if elementwise_fn is not None:
        y = elementwise_fn(y)
    o_ref[...] = y.astype(o_ref.dtype)


def _stats_kernel(x_ref, sum_ref, sq_ref, acc_s_ref, acc_q_ref):
    """Pass 1: per-sample sum / sum-of-squares, VPU-only accumulation, XLU reduce once."""
    k = pl.program_id(1)

    @pl.when(k == 0)
    def _():
        acc_s_ref[...] = jnp.zeros_like(acc_s_ref)
        acc_q_ref[...] = jnp.zeros_like(acc_q_ref)

    x = x_ref[...].astype(jnp.float32)          # (TB, C, T)
    acc_s_ref[...] += x                          # pure elementwise adds across k
    acc_q_ref[...] += x * x

    @pl.when(k == pl.num_programs(1) - 1)
    def _():                                     # single cross-lane/sublane reduction
        sum_ref[...] = jnp.sum(acc_s_ref[...], axis=(1, 2), keepdims=True)
        sq_ref[...] = jnp.sum(acc_q_ref[...], axis=(1, 2), keepdims=True)


def _apply_kernel(x_ref, sum_ref, sq_ref, gamma_ref, beta_ref, o_ref, *,
                  inv_count, eps, elementwise_fn):
    """Pass 2: fold sum/sumsq -> scale/shift in-kernel, then y = x*scale + shift."""
    mean = sum_ref[...] * inv_count                                   # (TB, 1, 1)
    # NOTE: E[x^2]-mean^2 can lose precision if |mean| >> std; only used on the
    # fallback path (huge samples). The primary single-pass path is exact-centered.
    var = jnp.maximum(sq_ref[...] * inv_count - mean * mean, 0.0)
    inv_std = lax.rsqrt(var + eps)
    scale = gamma_ref[...] * inv_std                                  # (TB, C, 1)
    shift = beta_ref[...] - mean * scale
    y = x_ref[...].astype(jnp.float32) * scale + shift
    if elementwise_fn is not None:
        y = elementwise_fn(y)
    o_ref[...] = y.astype(o_ref.dtype)


# --------------------------------------------------------------------------- #
# Wrapper
# --------------------------------------------------------------------------- #
def groupnorm_1group(x_nchw, gamma, beta, elementwise_fn=None, eps=_EPS,
                     _debug_max_block_bytes=None):
    """GroupNorm(num_groups=1, num_channels=C) on NCHW input via Pallas."""
    n, c, h, w = x_nchw.shape
    hw = h * w
    dtype = x_nchw.dtype
    itemsize = jnp.dtype(dtype).itemsize

    # Lane-dense spatial axis: zero-pad HW up to a multiple of 128.
    hw_pad = _round_up(hw, 128)
    x3 = x_nchw.reshape(n, c, hw)
    if hw_pad != hw:
        x3 = jnp.pad(x3, ((0, 0), (0, 0), (0, hw_pad - hw)))

    count = float(c * hw)                      # true (unpadded) element count per sample
    inv_count = 1.0 / count
    gamma3 = gamma.astype(jnp.float32).reshape(1, c, 1)
    beta3 = beta.astype(jnp.float32).reshape(1, c, 1)

    vmem_limit = _vmem_limit_bytes()
    block_budget = (_debug_max_block_bytes if _debug_max_block_bytes is not None
                    else vmem_limit // 2)

    # -------------------- Single-pass fused path (preferred) ------------------ #
    # Bytes/elem: double-buffered in + out plus f32 working copies headroom.
    bpe_single = 4 * itemsize + 8
    per_sample_bytes = c * hw_pad * bpe_single
    if per_sample_bytes <= block_budget:
        tb = _pick_batch_tile(n, per_sample_bytes, block_budget)
        nb = n // tb
        kernel = functools.partial(
            _fused_groupnorm_kernel,
            inv_count=inv_count,
            pad_count=float(c * (hw_pad - hw)),
            eps=eps,
            elementwise_fn=elementwise_fn,
        )
        out = pl.pallas_call(
            kernel,
            out_shape=jax.ShapeDtypeStruct((n, c, hw_pad), dtype),
            grid_spec=pltpu.PrefetchScalarGridSpec(
                num_scalar_prefetch=0,
                grid=(nb,),
                in_specs=[pl.BlockSpec((tb, c, hw_pad), lambda b: (b, 0, 0)),
                          pl.BlockSpec((1, c, 1), lambda b: (0, 0, 0)),
                          pl.BlockSpec((1, c, 1), lambda b: (0, 0, 0))],
                out_specs=pl.BlockSpec((tb, c, hw_pad), lambda b: (b, 0, 0)),
            ),
            compiler_params=pltpu.CompilerParams(
                dimension_semantics=("parallel",),
                vmem_limit_bytes=vmem_limit,
            ),
        )(x3, gamma3, beta3)
    else:
        # ------------------------ Two-pass fallback --------------------------- #
        # Bytes/elem: max(pass1: 2x input + 2 f32 scratch, pass2: 2x in + 2x out + f32 temp)
        bpe_two = max(2 * itemsize + 8, 4 * itemsize + 4)
        t = _pick_spatial_tile(hw_pad, c, bpe_two, block_budget)
        tb = _pick_batch_tile(n, c * t * bpe_two, block_budget)
        nb, kt = n // tb, hw_pad // t

        # Pass 1: per-sample statistics (single sweep over x).
        sum_x, sum_x2 = pl.pallas_call(
            _stats_kernel,
            out_shape=(jax.ShapeDtypeStruct((n, 1, 1), jnp.float32),
                       jax.ShapeDtypeStruct((n, 1, 1), jnp.float32)),
            grid_spec=pltpu.PrefetchScalarGridSpec(
                num_scalar_prefetch=0,
                grid=(nb, kt),
                in_specs=[pl.BlockSpec((tb, c, t), lambda b, k: (b, 0, k))],
                out_specs=(pl.BlockSpec((tb, 1, 1), lambda b, k: (b, 0, 0)),
                           pl.BlockSpec((tb, 1, 1), lambda b, k: (b, 0, 0))),
                scratch_shapes=[pltpu.VMEM((tb, c, t), jnp.float32),
                                pltpu.VMEM((tb, c, t), jnp.float32)],
            ),
            compiler_params=pltpu.CompilerParams(
                dimension_semantics=("parallel", "arbitrary"),
                vmem_limit_bytes=vmem_limit,
            ),
        )(x3)

        # Pass 2: normalize + affine (+ fused elementwise fn); scale/shift folded in-kernel.
        kernel = functools.partial(
            _apply_kernel, inv_count=inv_count, eps=eps, elementwise_fn=elementwise_fn)
        out = pl.pallas_call(
            kernel,
            out_shape=jax.ShapeDtypeStruct((n, c, hw_pad), dtype),
            grid_spec=pltpu.PrefetchScalarGridSpec(
                num_scalar_prefetch=0,
                grid=(nb, kt),
                in_specs=[pl.BlockSpec((tb, c, t), lambda b, k: (b, 0, k)),
                          pl.BlockSpec((tb, 1, 1), lambda b, k: (b, 0, 0)),
                          pl.BlockSpec((tb, 1, 1), lambda b, k: (b, 0, 0)),
                          pl.BlockSpec((1, c, 1), lambda b, k: (0, 0, 0)),
                          pl.BlockSpec((1, c, 1), lambda b, k: (0, 0, 0))],
                out_specs=pl.BlockSpec((tb, c, t), lambda b, k: (b, 0, k)),
            ),
            compiler_params=pltpu.CompilerParams(
                dimension_semantics=("parallel", "parallel"),
                vmem_limit_bytes=vmem_limit,
            ),
        )(x3, sum_x, sum_x2, gamma3, beta3)

    if hw_pad != hw:
        out = out[:, :, :hw]
    return out.reshape(n, c, h, w)


class PreNorm:
    """JAX/Pallas equivalent of the PyTorch PreNorm module.

    forward(x) = fn(GroupNorm(1, dim)(x)), x is NCHW.
    If `fn_is_elementwise=True`, fn is fused into the Pallas normalize/store
    pass (no extra HBM round trip); otherwise fn (e.g. attention / conv) is
    applied as ordinary JAX on the kernel output.
    """

    def __init__(self, dim, fn, key=None, fn_is_elementwise=False):
        self.fn = fn
        self.fn_is_elementwise = fn_is_elementwise
        if key is None:
            # PyTorch GroupNorm default init: weight=1, bias=0.
            self.gamma = jnp.ones((dim,), jnp.float32)
            self.beta = jnp.zeros((dim,), jnp.float32)
        else:
            kg, kb = jax.random.split(key)
            self.gamma = jax.random.normal(kg, (dim,), jnp.float32)
            self.beta = jax.random.normal(kb, (dim,), jnp.float32)

    def __call__(self, x):
        if self.fn_is_elementwise:
            return groupnorm_1group(x, self.gamma, self.beta, elementwise_fn=self.fn)
        # TODO(synk): non-elementwise fn (attention/conv blocks) composed as plain JAX.
        return self.fn(groupnorm_1group(x, self.gamma, self.beta))


def _reference_groupnorm(x, gamma, beta):
    n, c, h, w = x.shape
    xf = x.astype(jnp.float32).reshape(n, -1)
    mean = xf.mean(axis=1, keepdims=True)
    var = ((xf - mean) ** 2).mean(axis=1, keepdims=True)
    xhat = ((xf - mean) / jnp.sqrt(var + _EPS)).reshape(n, c, h, w)
    return xhat * gamma.reshape(1, c, 1, 1) + beta.reshape(1, c, 1, 1)


if __name__ == "__main__":
    key = jax.random.PRNGKey(0)
    kx, kparams, kx2 = jax.random.split(key, 3)

    # Small NCHW input consistent with the module's conv-style usage.
    N, C, H, W = 2, 4, 16, 16
    x = jax.random.normal(kx, (N, C, H, W), jnp.float32)

    # 1) Fused elementwise fn (silu) in the single-pass kernel.
    prenorm_fused = PreNorm(C, fn=jax.nn.silu, key=kparams, fn_is_elementwise=True)
    out_fused = jax.block_until_ready(prenorm_fused(x))

    # 2) External (non-fusable) fn path — identity stand-in.
    prenorm_ext = PreNorm(C, fn=lambda t: t, key=kparams)
    out_ext = jax.block_until_ready(prenorm_ext(x))

    ref_gn = _reference_groupnorm(x, prenorm_fused.gamma, prenorm_fused.beta)
    assert out_fused.shape == (N, C, H, W)
    assert jnp.allclose(out_fused, jax.nn.silu(ref_gn), atol=1e-4, rtol=1e-4), "fused mismatch"
    assert jnp.allclose(out_ext, ref_gn, atol=1e-4, rtol=1e-4), "external-fn mismatch"

    # 3) Forced two-pass fallback path (tiny debug budget) — same semantics.
    out_two = jax.block_until_ready(
        groupnorm_1group(x, prenorm_fused.gamma, prenorm_fused.beta,
                         _debug_max_block_bytes=8 * 1024))
    assert jnp.allclose(out_two, ref_gn, atol=1e-4, rtol=1e-4), "two-pass mismatch"

    # 4) Non-128-divisible spatial size (exercises zero-pad + slice path).
    x_odd = jax.random.normal(kx2, (2, 4, 5, 7), jnp.float32)
    gam1 = jnp.ones((4,), jnp.float32)
    bet0 = jnp.zeros((4,), jnp.float32)
    out_odd = jax.block_until_ready(groupnorm_1group(x_odd, gam1, bet0))
    assert jnp.allclose(out_odd, _reference_groupnorm(x_odd, gam1, bet0),
                        atol=1e-4, rtol=1e-4), "padded-HW mismatch"

    # 5) bf16 I/O path (f32 in-kernel statistics).
    x_bf = x.astype(jnp.bfloat16)
    out_bf = jax.block_until_ready(
        groupnorm_1group(x_bf, prenorm_fused.gamma, prenorm_fused.beta))
    ref_bf = _reference_groupnorm(x_bf.astype(jnp.float32),
                                  prenorm_fused.gamma, prenorm_fused.beta)
    assert jnp.allclose(out_bf.astype(jnp.float32), ref_bf, atol=6e-2, rtol=6e-2), "bf16 mismatch"

    print("KERNEL_OK")
</pallas_src>

<mosaic_0001>
module attributes {stable_mosaic.version = 11 : i64} {
  func.func @_fused_groupnorm_kernel(%arg0: i32, %arg1: memref<1x4x256xf32, #tpu.memory_space<vmem>>, %arg2: memref<1x4x1xf32, #tpu.memory_space<vmem>>, %arg3: memref<1x4x1xf32, #tpu.memory_space<vmem>>, %arg4: memref<1x4x256xf32, #tpu.memory_space<vmem>>) attributes {dimension_semantics = [#tpu.dimension_semantics<parallel>], iteration_bounds = array<i64: 2>, scalar_prefetch = 0 : i64, scratch_operands = 0 : i64, tpu.core_type = #tpu.core_type<tc>, window_params = [{transform_indices = @transform_0, window_bounds = array<i64: 1, 4, 256>}, {pipeline_mode = #tpu.pipeline_mode<synchronous>, transform_indices = @transform_1, window_bounds = array<i64: 1, 4, 1>}, {pipeline_mode = #tpu.pipeline_mode<synchronous>, transform_indices = @transform_2, window_bounds = array<i64: 1, 4, 1>}, {transform_indices = @transform_3, window_bounds = array<i64: 1, 4, 256>}]} {
    %c0 = arith.constant 0 : index
    %c0_0 = arith.constant 0 : index
    %c0_1 = arith.constant 0 : index
    %0 = vector.load %arg1[%c0, %c0_0, %c0_1] : memref<1x4x256xf32, #tpu.memory_space<vmem>>, vector<1x4x256xf32>
    %cst = arith.constant dense<0.000000e+00> : vector<1xf32>
    %1 = vector.multi_reduction <add>, %0, %cst [1, 2] : vector<1x4x256xf32> to vector<1xf32>
    %2 = vector.shape_cast %1 : vector<1xf32> to vector<1x1x1xf32>
    %cst_2 = arith.constant 9.765625E-4 : f32
    %3 = vector.broadcast %cst_2 : f32 to vector<1x1x1xf32>
    %4 = arith.mulf %2, %3 : vector<1x1x1xf32>
    %5 = vector.broadcast %4 : vector<1x1x1xf32> to vector<1x4x256xf32>
    %6 = arith.subf %0, %5 : vector<1x4x256xf32>
    %7 = arith.mulf %6, %6 : vector<1x4x256xf32>
    %cst_3 = arith.constant dense<0.000000e+00> : vector<1xf32>
    %8 = vector.multi_reduction <add>, %7, %cst_3 [1, 2] : vector<1x4x256xf32> to vector<1xf32>
    %9 = vector.shape_cast %8 : vector<1xf32> to vector<1x1x1xf32>
    %cst_4 = arith.constant 9.765625E-4 : f32
    %10 = vector.broadcast %cst_4 : f32 to vector<1x1x1xf32>
    %11 = arith.mulf %9, %10 : vector<1x1x1xf32>
    %cst_5 = arith.constant 0.000000e+00 : f32
    %12 = vector.broadcast %cst_5 : f32 to vector<1x1x1xf32>
    %13 = arith.maximumf %11, %12 : vector<1x1x1xf32>
    %cst_6 = arith.constant 9.99999974E-6 : f32
    %14 = vector.broadcast %cst_6 : f32 to vector<1x1x1xf32>
    %15 = arith.addf %13, %14 : vector<1x1x1xf32>
    %16 = math.rsqrt %15 : vector<1x1x1xf32>
    %c0_7 = arith.constant 0 : index
    %c0_8 = arith.constant 0 : index
    %c0_9 = arith.constant 0 : index
    %17 = vector.load %arg2[%c0_7, %c0_8, %c0_9] : memref<1x4x1xf32, #tpu.memory_space<vmem>>, vector<1x4x1xf32>
    %18 = vector.broadcast %16 : vector<1x1x1xf32> to vector<1x4x1xf32>
    %19 = arith.mulf %17, %18 : vector<1x4x1xf32>
    %20 = vector.broadcast %19 : vector<1x4x1xf32> to vector<1x4x256xf32>
    %21 = arith.mulf %6, %20 : vector<1x4x256xf32>
    %c0_10 = arith.constant 0 : index
    %c0_11 = arith.constant 0 : index
    %c0_12 = arith.constant 0 : index
    %22 = vector.load %arg3[%c0_10, %c0_11, %c0_12] : memref<1x4x1xf32, #tpu.memory_space<vmem>>, vector<1x4x1xf32>
    %23 = vector.broadcast %22 : vector<1x4x1xf32> to vector<1x4x256xf32>
    %24 = arith.addf %21, %23 : vector<1x4x256xf32>
    %25 = arith.negf %24 : vector<1x4x256xf32>
    %26 = math.exp %25 : vector<1x4x256xf32>
    %cst_13 = arith.constant 1.000000e+00 : f32
    %27 = vector.broadcast %cst_13 : f32 to vector<1x4x256xf32>
    %28 = arith.addf %27, %26 : vector<1x4x256xf32>
    %29 = arith.divf %27, %28 : vector<1x4x256xf32>
    %30 = arith.mulf %24, %29 : vector<1x4x256xf32>
    %c0_14 = arith.constant 0 : index
    %c0_15 = arith.constant 0 : index
    %c0_16 = arith.constant 0 : index
    %31 = vector.load %arg4[%c0_14, %c0_15, %c0_16] : memref<1x4x256xf32, #tpu.memory_space<vmem>>, vector<1x4x256xf32>
    tpu.vector_store %arg4[%c0_14, %c0_15, %c0_16], %30 {strides = array<i32>} : memref<1x4x256xf32, #tpu.memory_space<vmem>>, vector<1x4x256xf32>,
    return
  }
  func.func @transform_0(%arg0: i32) -> (i32, i32, i32) {
    %c0_i32 = arith.constant 0 : i32
    %c0_i32_0 = arith.constant 0 : i32
    %c0_i32_1 = arith.constant 0 : i32
    return %arg0, %c0_i32, %c0_i32_0 : i32, i32, i32
  }
  func.func @transform_1(%arg0: i32) -> (i32, i32, i32) {
    %c0_i32 = arith.constant 0 : i32
    %c0_i32_0 = arith.constant 0 : i32
    %c0_i32_1 = arith.constant 0 : i32
    %c0_i32_2 = arith.constant 0 : i32
    return %c0_i32, %c0_i32_0, %c0_i32_1 : i32, i32, i32
  }
  func.func @transform_2(%arg0: i32) -> (i32, i32, i32) {
    %c0_i32 = arith.constant 0 : i32
    %c0_i32_0 = arith.constant 0 : i32
    %c0_i32_1 = arith.constant 0 : i32
    %c0_i32_2 = arith.constant 0 : i32
    return %c0_i32, %c0_i32_0, %c0_i32_1 : i32, i32, i32
  }
  func.func @transform_3(%arg0: i32) -> (i32, i32, i32) {
    %c0_i32 = arith.constant 0 : i32
    %c0_i32_0 = arith.constant 0 : i32
    %c0_i32_1 = arith.constant 0 : i32
    return %arg0, %c0_i32, %c0_i32_0 : i32, i32, i32
  }
}

</mosaic_0001>

<llo_original>
// kernel: tpu_custom_call.1
$region0: #{tpu_custom_call.1}
  #allocation0 [shape = 'u32[]', space=smem, size = 0x4, offset = 0x4, fixed_abs, tag = 'smem constant byte address 0x4 - core index']
  #allocation1 [shape = 'u32[144,128]{1,0:T(1,128)}', space=vmem, size = 0x12000, scoped, tag = 'internal scratch']
  %s0 = inlined_call_operand.hbm [shape: f32[2,4,256], index: 0, kind: input, shape index: {}]
  %s1 = inlined_call_operand.vmem [shape: f32[1,4,1], index: 1, kind: input, shape index: {}]
  %s2 = inlined_call_operand.vmem [shape: f32[1,4,1], index: 2, kind: input, shape index: {}]
  %s3 = inlined_call_operand.hbm [shape: f32[2,4,256], index: 3, kind: output, shape index: {}]
  %s4 = sld [smem:[#allocation0]]
  $region49: #{tpu_custom_call.1} parent=0
    _
  %s6 = ssub.s32 1, %s4
  %s7 = scalar_select 0, %s6, %s4
  $region1: #{tpu_custom_call.1} parent=0
    #allocation2 [shape = 'u8[8192]{0}', space=vmem, size = 0x2000, scoped, tag = 'input window, operand 0']
    #allocation3 [shape = 's32[2]{0}', space=sflag, size = 0x8, scoped, tag = 'scoped memory for tpu_custom_call.1']
    #allocation4 [shape = 's32[2]{0}', space=sflag, size = 0x8, scoped, tag = 'scoped memory for tpu_custom_call.1']
    #allocation5 [shape = 'u8[8192]{0}', space=vmem, size = 0x2000, scoped, tag = 'output window, operand 0']
    %8 = vsyncpa [#allocation3], 0
    %s9 = scalar_lea.sflag [#allocation3], 1
    %10 = vsyncpa %s9, 0
    %11 = vsyncpa [#allocation4], 0
    %s12 = scalar_lea.sflag [#allocation4], 1
    %13 = vsyncpa %s12, 0
    loop: start=0, step=1, limit=4
    $region2: #{tpu_custom_call.1} parent=1 // loop_pre_header
      _
    $region3: #{tpu_custom_call.1} parent=1 // loop_header
      %s15 = sphi 0, %s19
      %p16 = scmp.ge.s32.totalorder %s15, 4
      %s25 = sphi 0, %s27
      %s28 = sphi 0, %s25
      %s29 = sphi 0, %s28
      %s45 = sphi 0, %s29
      %s49 = sphi 0, %s49
      %s51 = sphi 0, %s49
      %s52 = sphi 0, %s51
      %s66 = sphi 0, %s52
      %s70 = sphi 0, %s70
      %s72 = sphi 0, %s70
      %s73 = sphi 0, %s72
      %s87 = sphi 0, %s73
      %s93 = sphi 0, %s95
      %s96 = sphi 0, %s93
      %s97 = sphi 0, %s96
      %s113 = sphi 0, %s97
    $region4: #{tpu_custom_call.1} parent=1 // loop_header_branch
      %18 = sbr.rel (%p16) target = $region8
    $region5: #{tpu_custom_call.1} parent=1 // loop_body
      %s20 = ssub.s32 %s15, 1
      %s21 = ssub.s32 %s15, 2
      %s22 = sadd.s32 %s15, 1
      %s23 = ssub.s32 %s15, %s22
      %p24 = scmp.eq.s32.totalorder %s23, 0
      %s26 = sadd.s32 %s25, 1
      %s27 = scalar_select %p24, %s25, %s26
      %p30 = pneg %p24
      %p31 = scmp.eq.s32.totalorder %s15, 1
      %p32 = por %p30, %p31
      %p33 = scmp.ne.s32.totalorder %s25, %s28
      %p34 = scmp.eq.s32.totalorder %s15, 0
      %p35 = por %p33, %p34
      %p36 = scmp.ne.s32.totalorder %s25, %s28
      %p37 = scmp.eq.s32.totalorder %s20, 1
      %p38 = por %p36, %p37
      %p39 = scmp.ne.s32.totalorder %s28, %s29
      %p40 = scmp.eq.s32.totalorder %s20, 0
      %p41 = por %p39, %p40
      %p42 = scmp.ne.s32.totalorder %s28, %s29
      %p43 = scmp.eq.s32.totalorder %s21, 1
      %p44 = por %p42, %p43
      %p46 = scmp.ne.s32.totalorder %s29, %s45
      %p47 = scmp.eq.s32.totalorder %s21, 0
      %p48 = por %p46, %p47
      %s50 = sadd.s32 %s49, 1
      %p53 = scmp.eq.s32.totalorder %s15, 1
      %p54 = scmp.ne.s32.totalorder %s49, %s51
      %p55 = scmp.eq.s32.totalorder %s15, 0
      %p56 = por %p54, %p55
      %p57 = scmp.ne.s32.totalorder %s49, %s51
      %p58 = scmp.eq.s32.totalorder %s20, 1
      %p59 = por %p57, %p58
      %p60 = scmp.ne.s32.totalorder %s51, %s52
      %p61 = scmp.eq.s32.totalorder %s20, 0
      %p62 = por %p60, %p61
      %p63 = scmp.ne.s32.totalorder %s51, %s52
      %p64 = scmp.eq.s32.totalorder %s21, 1
      %p65 = por %p63, %p64
      %p67 = scmp.ne.s32.totalorder %s52, %s66
      %p68 = scmp.eq.s32.totalorder %s21, 0
      %p69 = por %p67, %p68
      %s71 = sadd.s32 %s70, 1
      %p74 = scmp.eq.s32.totalorder %s15, 1
      %p75 = scmp.ne.s32.totalorder %s70, %s72
      %p76 = scmp.eq.s32.totalorder %s15, 0
      %p77 = por %p75, %p76
      %p78 = scmp.ne.s32.totalorder %s70, %s72
      %p79 = scmp.eq.s32.totalorder %s20, 1
      %p80 = por %p78, %p79
      %p81 = scmp.ne.s32.totalorder %s72, %s73
      %p82 = scmp.eq.s32.totalorder %s20, 0
      %p83 = por %p81, %p82
      %p84 = scmp.ne.s32.totalorder %s72, %s73
      %p85 = scmp.eq.s32.totalorder %s21, 1
      %p86 = por %p84, %p85
      %p88 = scmp.ne.s32.totalorder %s73, %s87
      %p89 = scmp.eq.s32.totalorder %s21, 0
      %p90 = por %p88, %p89
      %s91 = ssub.s32 %s15, %s22
      %p92 = scmp.eq.s32.totalorder %s91, 0
      %s94 = sadd.s32 %s93, 1
      %s95 = scalar_select %p92, %s93, %s94
      %p98 = pneg %p92
      %p99 = scmp.eq.s32.totalorder %s15, 1
      %p100 = por %p98, %p99
      %p101 = scmp.ne.s32.totalorder %s93, %s96
      %p102 = scmp.eq.s32.totalorder %s15, 0
      %p103 = por %p101, %p102
      %p104 = scmp.ne.s32.totalorder %s93, %s96
      %p105 = scmp.eq.s32.totalorder %s20, 1
      %p106 = por %p104, %p105
      %p107 = scmp.ne.s32.totalorder %s96, %s97
      %p108 = scmp.eq.s32.totalorder %s20, 0
      %p109 = por %p107, %p108
      %p110 = scmp.ne.s32.totalorder %s96, %s97
      %p111 = scmp.eq.s32.totalorder %s21, 1
      %p112 = por %p110, %p111
      %p114 = scmp.ne.s32.totalorder %s97, %s113
      %p115 = scmp.eq.s32.totalorder %s21, 0
      %p116 = por %p114, %p115
      %p117 = scmp.le.s32.totalorder 1, %s15
      %p118 = scmp.lt.s32.totalorder %s15, 3
      %p119 = pnand %p117, %p118
      %p120 = pneg %p119
      // Predicated region
      $region9: #{tpu_custom_call.1} parent=5 // pred_check
        _
      $region10: #{tpu_custom_call.1} parent=5 // pred_check_branch
        %122 = sbr.rel (%p119) target = $region12
      $region11: #{tpu_custom_call.1} parent=5 // pred_region
        %s123 = ssub.s32 %s15, 1
        // Predicated region
        $region13: #{tpu_custom_call.1} parent=11 // pred_check
          %p124 = pneg %p62
        $region14: #{tpu_custom_call.1} parent=11 // pred_check_branch
          %126 = sbr.rel (%p124) target = $region16
        $region15: #{tpu_custom_call.1} parent=11 // pred_region
          _
        $region16: #{tpu_custom_call.1} parent=11 // pred_fallthru
          _
        // Predicated region
        $region17: #{tpu_custom_call.1} parent=11 // pred_check
          %p127 = pneg %p83
        $region18: #{tpu_custom_call.1} parent=11 // pred_check_branch
          %129 = sbr.rel (%p127) target = $region20
        $region19: #{tpu_custom_call.1} parent=11 // pred_region
          _
        $region20: #{tpu_custom_call.1} parent=11 // pred_fallthru
          _
      $region12: #{tpu_custom_call.1} parent=5 // pred_fallthru
        _
      %p130 = scmp.lt.s32.totalorder %s15, 2
      // Predicated region
      $region21: #{tpu_custom_call.1} parent=5 // pred_check
        %p131 = pneg %p130
      $region22: #{tpu_custom_call.1} parent=5 // pred_check_branch
        %133 = sbr.rel (%p131) target = $region24
      $region23: #{tpu_custom_call.1} parent=5 // pred_region
        // Predicated region
        $region25: #{tpu_custom_call.1} parent=23 // pred_check
          %p134 = pneg %p35
        $region26: #{tpu_custom_call.1} parent=23 // pred_check_branch
          %136 = sbr.rel (%p134) target = $region28
        $region27: #{tpu_custom_call.1} parent=23 // pred_region
          %s137 = sand.u32 %s25, 1
          %s138 = scalar_lea.sflag [#allocation3], %s137
          %s139 = sand.u32 %s25, 1
          %s140 = smul.addr %s139, 8
          %s141 = scalar_lea.vmem [#allocation2], %s140
          %s143 = ssub.s32 128, 128
          %144 = vsyncadd %s138, %s143
          %s145 = smul.addr %s15, 2
          %s146 = smul.addr %s145, 64
          %s147 = scalar_lea.hbm %s0, %s146
          %s149 = sshll.u32 %s141, 4
          %s150 = int_to_ptr.vmem [resolvable:$true] %s149
          %152 = dma.hbm_to_vmem [thread:$0]  %s147, 128, %s150, %s138
        $region28: #{tpu_custom_call.1} parent=23 // pred_fallthru
          _
      $region24: #{tpu_custom_call.1} parent=5 // pred_fallthru
        _
      %p153 = scmp.le.s32.totalorder 1, %s15
      %p154 = scmp.lt.s32.totalorder %s15, 3
      %p155 = pnand %p153, %p154
      %p156 = pneg %p155
      // Predicated region
      $region29: #{tpu_custom_call.1} parent=5 // pred_check
        _
      $region30: #{tpu_custom_call.1} parent=5 // pred_check_branch
        %158 = sbr.rel (%p155) target = $region32
      $region31: #{tpu_custom_call.1} parent=5 // pred_region
        %s159 = ssub.s32 %s15, 1
        %s160 = sand.u32 %s28, 1
        %s161 = scalar_lea.sflag [#allocation3], %s160
        %s162 = sand.u32 %s28, 1
        %s163 = smul.addr %s162, 8
        %s164 = scalar_lea.vmem [#allocation2], %s163
        // Predicated region
        $region33: #{tpu_custom_call.1} parent=31 // pred_check
          %p165 = pneg %p41
        $region34: #{tpu_custom_call.1} parent=31 // pred_check_branch
          %167 = sbr.rel (%p165) target = $region36
        $region35: #{tpu_custom_call.1} parent=31 // pred_region
          %168 = dma.done %s161, 128
        $region36: #{tpu_custom_call.1} parent=31 // pred_fallthru
          _
        %s169 = sand.u32 %s28, 1
        %s170 = scalar_lea.sflag [#allocation3], %s169
        %s171 = sand.u32 %s28, 1
        %s172 = smul.addr %s171, 8
        %s173 = scalar_lea.vmem [#allocation2], %s172
        %p174 = pneg %p41
        %p175 = pneg %p38
        %p176 = pneg %p62
        %p177 = pneg %p59
        %p178 = pneg %p83
        %p179 = pneg %p80
        %p180 = pneg %p109
        %p181 = pneg %p106
        %s182 = sand.u32 %s96, 1
        %s183 = scalar_lea.sflag [#allocation4], %s182
        %s184 = sand.u32 %s96, 1
        %s185 = smul.addr %s184, 8
        %s186 = scalar_lea.vmem [#allocation5], %s185
        %v187 = vld [vmem:[%s164] sm:$0xff]
        %v189 = vcombine.high %v187, %v187
        %vm191 = vcmask 1043456
        %v192 = vsel %vm191, %v187, 0.0
        %v193 = vsel %vm191, %v189, 0.0
        %v194 = vadd.f32 %v192, %v193
        %195 = vadd.xlane.f32.xlu0 %v194
        %v196 = vpop.xlane.xlu0 %195
        %v197 = vrot.slane %v196, 4
        %v198 = vadd.f32 %v196, %v197
        %v199 = vrot.slane %v198, 2
        %v200 = vadd.f32 %v198, %v199
        %v201 = vrot.slane %v200, 1
        %v202 = vadd.f32 %v200, %v201
        %v203 = vmul.f32 %v202, 0.0009765625
        %v204 = vsub.f32 %v187, %v203
        %v205 = vmul.f32 %v204, %v204
        %v207 = vcombine.high %v205, %v205
        %v209 = vsel %vm191, %v205, 0.0
        %v210 = vsel %vm191, %v207, 0.0
        %v211 = vadd.f32 %v209, %v210
        %212 = vadd.xlane.f32.xlu0 %v211
        %v213 = vpop.xlane.xlu0 %212
        %v214 = vrot.slane %v213, 4
        %v215 = vadd.f32 %v213, %v214
        %v216 = vrot.slane %v215, 2
        %v217 = vadd.f32 %v215, %v216
        %v218 = vrot.slane %v217, 1
        %v219 = vadd.f32 %v217, %v218
        %v220 = vmul.f32 %v219, 0.0009765625
        %v221 = vmax.f32 %v220, 0.0
        %v222 = vadd.f32 %v221, 1e-05
        %v223 = vrsqrt.pop %v222
        %v224 = vld [vmem:[%s1] sm:$0xf]
        %v225 = vmul.f32 %v224, %v223
        %227 = vset.pattern.permute.xlu0 0
        %228 = vperm.xlu0 %227, %v225
        %v229 = vpop.permute.xlu0 %228
        %v231 = vunpack.c.l.s4 839922192
        %v232 = vunpack.c.0.s8 %v231
        %v233 = vlaneseq
        %v234 = vshrl.u32 %v233, 7
        %v235 = vsub.s32 %v232, %v234
        %v236 = vrot.slane %v229, %v235
        %v238 = vmul.f32 %v204, %v236
        %v239 = vld [vmem:[%s2] sm:$0xf]
        %241 = vset.pattern.permute.xlu0 0
        %242 = vperm.xlu0 %241, %v239
        %v243 = vpop.permute.xlu0 %242
        %v245 = vunpack.c.l.s4 839922192
        %v246 = vunpack.c.0.s8 %v245
        %v247 = vlaneseq
        %v248 = vshrl.u32 %v247, 7
        %v249 = vsub.s32 %v246, %v248
        %v250 = vrot.slane %v243, %v249
        %v252 = vadd.f32 %v238, %v250
        %v253 = vxor.u32 %v252, 2147483648
        %v254 = vmul.f32 %v253, 1.442695
        %v255 = vpow.pop %v254
        %v256 = vadd.f32 %v255, 1.0
        %v257 = vrcp.pop %v256
        %v258 = vmul.f32 1.0, %v257
        %v259 = vmul.f32 %v252, %v258
        %260 = vst [vmem:[%s186] sm:$0xff] %v259
        %s261 = sand.u32 %s96, 1
        %s262 = scalar_lea.sflag [#allocation4], %s261
        %s263 = sand.u32 %s96, 1
        %s264 = smul.addr %s263, 8
        %s265 = scalar_lea.vmem [#allocation5], %s264
        // Predicated region
        $region37: #{tpu_custom_call.1} parent=31 // pred_check
          %p266 = pneg %p106
        $region38: #{tpu_custom_call.1} parent=31 // pred_check_branch
          %268 = sbr.rel (%p266) target = $region40
        $region39: #{tpu_custom_call.1} parent=31 // pred_region
          %s270 = ssub.s32 128, 128
          %271 = vsyncadd %s262, %s270
          %s272 = smul.addr %s20, 2
          %s273 = smul.addr %s272, 64
          %s274 = scalar_lea.hbm %s3, %s273
          %s276 = sshll.u32 %s265, 4
          %s277 = int_to_ptr.vmem [resolvable:$true] %s276
          %279 = dma.vmem_to_hbm [thread:$0]  %s277, 128, %s274, %s262
        $region40: #{tpu_custom_call.1} parent=31 // pred_fallthru
          _
      $region32: #{tpu_custom_call.1} parent=5 // pred_fallthru
        _
      %p280 = scmp.le.s32.totalorder 2, %s15
      // Predicated region
      $region41: #{tpu_custom_call.1} parent=5 // pred_check
        %p281 = pneg %p280
      $region42: #{tpu_custom_call.1} parent=5 // pred_check_branch
        %283 = sbr.rel (%p281) target = $region44
      $region43: #{tpu_custom_call.1} parent=5 // pred_region
        %s284 = ssub.s32 %s15, 2
        // Predicated region
        $region45: #{tpu_custom_call.1} parent=43 // pred_check
          %p285 = pneg %p112
        $region46: #{tpu_custom_call.1} parent=43 // pred_check_branch
          %287 = sbr.rel (%p285) target = $region48
        $region47: #{tpu_custom_call.1} parent=43 // pred_region
          %s288 = sand.u32 %s97, 1
          %s289 = scalar_lea.sflag [#allocation4], %s288
          %s290 = sand.u32 %s97, 1
          %s291 = smul.addr %s290, 8
          %s292 = scalar_lea.vmem [#allocation5], %s291
          %293 = dma.done %s289, 128
        $region48: #{tpu_custom_call.1} parent=43 // pred_fallthru
          _
      $region44: #{tpu_custom_call.1} parent=5 // pred_fallthru
        _
    $region6: #{tpu_custom_call.1} parent=1 // loop_footer
      %s19 = sadd.s32 1, %s15
    $region7: #{tpu_custom_call.1} parent=1 // loop_footer_branch
      %14 = sbr.rel target = $region3
    $region8: #{tpu_custom_call.1} parent=1 // loop_exit
      _
    %294 = vsyncpa [#allocation3], 1
    %s295 = scalar_lea.sflag [#allocation3], 1
    %296 = vsyncpa %s295, 1
    %297 = vsyncpa [#allocation4], 1
    %s298 = scalar_lea.sflag [#allocation4], 1
    %299 = vsyncpa %s298, 1

</llo_original>
